<compile_context>
chip_gen: v7x
topology: tpu7x:2x2x1
jax: 0.10.0
libtpu: 0.0.40
codegen_flags: <defaults>
</compile_context>

<pallas_src>
import functools

import jax
import jax.numpy as jnp
from jax.experimental import pallas as pl
from jax.experimental.pallas import tpu as pltpu

LANE = 128
SUBLANE = 8
WBLK = 128            # rows per packed weight block (one 128x128 block per linear layer)
TM_LARGE = 512        # batch tile for large batches (multiple of 256; >=512 rows ~ HBM roofline)


def _round_up(n, m):
    return ((n + m - 1) // m) * m


# ----------------------------------------------------------------------------- kernel
def context_vae_kernel(xe_ref, w_ref, b_ref, out_ref, *, in_dim, out_dim):
    f32 = jnp.float32
    xe = xe_ref[...]                                     # (TM, 128): x | eps | zero-pad

    # -------- Encoder: Linear -> ReLU -> Linear -> ReLU (full 128-lane matmuls;
    # zero-padded weight rows/cols make eps lanes and pad lanes contribute exactly 0) ----
    h = jnp.dot(xe, w_ref[0 * WBLK:1 * WBLK, :], preferred_element_type=f32) + b_ref[0:1, :]
    h = jnp.maximum(h, 0.0)
    h = jnp.dot(h, w_ref[1 * WBLK:2 * WBLK, :], preferred_element_type=f32) + b_ref[1:2, :]
    h = jnp.maximum(h, 0.0)

    # -------- Fused mu|log_var head; columns are pre-placed at the OUTPUT lane positions:
    # mu at lanes [in_dim, in_dim+out), log_var at [in_dim+out, in_dim+2*out), zero elsewhere.
    head = jnp.dot(h, w_ref[2 * WBLK:3 * WBLK, :], preferred_element_type=f32) + b_ref[2:3, :]

    # -------- Reparameterize on the narrow latent lanes: z = eps * exp(0.5*log_var) + mu -
    mu = head[:, in_dim:in_dim + out_dim]
    log_var = head[:, in_dim + out_dim:in_dim + 2 * out_dim]
    eps = xe[:, in_dim:in_dim + out_dim]
    z = eps * jnp.exp(0.5 * log_var) + mu                # (TM, out_dim)

    # -------- Decoder: Linear -> ReLU -> Linear -> ReLU -> Linear ------------------------
    d = jnp.dot(z, w_ref[3 * WBLK:3 * WBLK + out_dim, :],
                preferred_element_type=f32) + b_ref[3:4, :]
    d = jnp.maximum(d, 0.0)
    d = jnp.dot(d, w_ref[4 * WBLK:5 * WBLK, :], preferred_element_type=f32) + b_ref[4:5, :]
    d = jnp.maximum(d, 0.0)
    recons = jnp.dot(d, w_ref[5 * WBLK:6 * WBLK, :], preferred_element_type=f32) + b_ref[5:6, :]

    # recons is nonzero only on lanes [0, in_dim); head only on [in_dim, in_dim+2*out):
    # a single lane-disjoint add assembles recons|mu|log_var -> ONE unmasked (TM,128) store.
    out_ref[...] = recons + head


# ------------------------------------------------------------------- param packing (init-time)
def pack_params(p, in_dim, hid, out_dim):
    """Pack all weights into one (6*128, 128) slab and all biases into one (8, 128) slab.
    Head (mu|log_var) is fused and its columns are placed at output lane positions."""
    assert max(in_dim, hid, out_dim) <= LANE and in_dim + 2 * out_dim <= LANE, \
        "feature widths must fit one 128-lane tile"

    w_slab = jnp.zeros((6 * WBLK, LANE), jnp.float32)

    def put_w(slab, blk, col_off, w):
        return slab.at[blk * WBLK: blk * WBLK + w.shape[0],
                       col_off:col_off + w.shape[1]].set(w)

    w_head = jnp.concatenate([p["w_mu"], p["w_lv"]], axis=1)          # [hid, 2*out]
    w_slab = put_w(w_slab, 0, 0, p["we_in"])        # encoder input   [in,  hid]
    w_slab = put_w(w_slab, 1, 0, p["we_h"])         # encoder hidden  [hid, hid]
    w_slab = put_w(w_slab, 2, in_dim, w_head)       # fused head at lanes [in, in+2*out)
    w_slab = put_w(w_slab, 3, 0, p["wd_in"])        # decoder input   [out, hid]
    w_slab = put_w(w_slab, 4, 0, p["wd_h"])         # decoder hidden  [hid, hid]
    w_slab = put_w(w_slab, 5, 0, p["wd_out"])       # decoder output  [hid, in]

    b_head = jnp.concatenate([p["b_mu"], p["b_lv"]], axis=1)          # [1, 2*out]
    b_slab = jnp.zeros((SUBLANE, LANE), jnp.float32)
    b_slab = b_slab.at[0, 0:hid].set(p["be_in"][0])
    b_slab = b_slab.at[1, 0:hid].set(p["be_h"][0])
    b_slab = b_slab.at[2, in_dim:in_dim + 2 * out_dim].set(b_head[0])
    b_slab = b_slab.at[3, 0:hid].set(p["bd_in"][0])
    b_slab = b_slab.at[4, 0:hid].set(p["bd_h"][0])
    b_slab = b_slab.at[5, 0:in_dim].set(p["bd_out"][0])
    return w_slab, b_slab


# --------------------------------------------------------------------------- wrapper (jitted)
@jax.jit
def context_vae_forward(x, eps, w_slab, b_slab):
    """Returns [recons, input, mu, log_var], mirroring ContextVAE.forward.
    Noise `eps` (torch.randn_like) is passed in explicitly."""
    B, in_dim = x.shape
    out_dim = eps.shape[1]
    assert in_dim + 2 * out_dim <= LANE, "packed output must fit one 128-lane tile"

    # batch tile: single full tile for small B, 512-row tiles (multiple of 256) for large B
    B_pad = _round_up(max(B, SUBLANE), SUBLANE)
    if B_pad >= TM_LARGE:
        tm = TM_LARGE
        B_pad = _round_up(B_pad, tm)
    else:
        tm = B_pad
    grid = (B_pad // tm,)

    # one lane-dense input slab: x | eps | zero-pad  (single concat + pad, fused under jit)
    pad_lanes = LANE - in_dim - out_dim
    xe = jnp.concatenate(
        [x.astype(jnp.float32), eps.astype(jnp.float32),
         jnp.zeros((B, pad_lanes), jnp.float32)], axis=-1)
    xe = jnp.pad(xe, ((0, B_pad - B), (0, 0)))

    flops = 2 * B_pad * (5 * LANE * LANE + out_dim * LANE)
    bytes_accessed = 4 * (B_pad * LANE * 2 + 6 * WBLK * LANE + SUBLANE * LANE)
    cost = pl.CostEstimate(flops=flops, transcendentals=B_pad * out_dim,
                           bytes_accessed=bytes_accessed)

    kernel = functools.partial(context_vae_kernel, in_dim=in_dim, out_dim=out_dim)

    out = pl.pallas_call(
        kernel,
        out_shape=jax.ShapeDtypeStruct((B_pad, LANE), jnp.float32),
        grid=grid,
        in_specs=[
            pl.BlockSpec((tm, LANE), lambda i: (i, 0)),            # streamed batch tiles
            pl.BlockSpec((6 * WBLK, LANE), lambda i: (0, 0)),      # weights: VMEM-resident
            pl.BlockSpec((SUBLANE, LANE), lambda i: (0, 0)),       # biases:  VMEM-resident
        ],
        out_specs=pl.BlockSpec((tm, LANE), lambda i: (i, 0)),
        compiler_params=pltpu.CompilerParams(dimension_semantics=("parallel",)),
        cost_estimate=cost,
    )(xe, w_slab, b_slab)

    recons = out[:B, 0:in_dim]
    mu = out[:B, in_dim:in_dim + out_dim]
    log_var = out[:B, in_dim + out_dim:in_dim + 2 * out_dim]
    return [recons, x, mu, log_var]


# ----------------------------------------------------------------- param construction
def make_params(key, in_dim, hidden_dim, out_dim):
    """Deterministic synthetic parameters. Weights stored transposed: [in, out]."""
    def lin(k, fan_in, fan_out):
        kw, kb = jax.random.split(k)
        bound = 1.0 / jnp.sqrt(fan_in)
        wt = jax.random.uniform(kw, (fan_in, fan_out), jnp.float32, -bound, bound)
        b = jax.random.uniform(kb, (1, fan_out), jnp.float32, -bound, bound)
        return wt, b

    keys = jax.random.split(key, 7)
    p = {}
    # encoder
    p["we_in"], p["be_in"] = lin(keys[0], in_dim, hidden_dim)
    p["we_h"], p["be_h"] = lin(keys[1], hidden_dim, hidden_dim)
    p["w_mu"], p["b_mu"] = lin(keys[2], hidden_dim, out_dim)
    p["w_lv"], p["b_lv"] = lin(keys[3], hidden_dim, out_dim)
    # decoder
    p["wd_in"], p["bd_in"] = lin(keys[4], out_dim, hidden_dim)
    p["wd_h"], p["bd_h"] = lin(keys[5], hidden_dim, hidden_dim)
    p["wd_out"], p["bd_out"] = lin(keys[6], hidden_dim, in_dim)
    return p


# ----------------------------------------------------------------------- reference
def reference_forward(x, eps, p):
    h = jnp.maximum(x @ p["we_in"] + p["be_in"], 0.0)
    h = jnp.maximum(h @ p["we_h"] + p["be_h"], 0.0)
    mu = h @ p["w_mu"] + p["b_mu"]
    log_var = h @ p["w_lv"] + p["b_lv"]
    z = eps * jnp.exp(0.5 * log_var) + mu
    d = jnp.maximum(z @ p["wd_in"] + p["bd_in"], 0.0)
    d = jnp.maximum(d @ p["wd_h"] + p["bd_h"], 0.0)
    recons = d @ p["wd_out"] + p["bd_out"]
    return recons, mu, log_var


if __name__ == "__main__":
    # Small config consistent with the module: in_dim = (state_sz+action_sz)*history_size
    state_sz, action_sz, history_size = 5, 1, 8      # -> in_dim = 48
    hidden_dim, out_dim = 32, 16
    B = 4
    in_dim = (state_sz + action_sz) * history_size

    key = jax.random.PRNGKey(0)
    k_x, k_eps, k_p = jax.random.split(key, 3)

    x = jax.random.normal(k_x, (B, in_dim), jnp.float32)
    # reparameterization noise (torch.randn_like) generated deterministically outside
    eps = jax.random.normal(k_eps, (B, out_dim), jnp.float32)
    params = make_params(k_p, in_dim, hidden_dim, out_dim)

    # weights are packed ONCE at init (hoisted out of the per-call path)
    w_slab, b_slab = pack_params(params, in_dim, hidden_dim, out_dim)

    recons, x_out, mu, log_var = context_vae_forward(x, eps, w_slab, b_slab)
    jax.block_until_ready((recons, mu, log_var))

    # correctness check against plain-JAX reference
    r_ref, mu_ref, lv_ref = reference_forward(x, eps, params)
    assert jnp.allclose(recons, r_ref, atol=1e-4), "recons mismatch"
    assert jnp.allclose(mu, mu_ref, atol=1e-5), "mu mismatch"
    assert jnp.allclose(log_var, lv_ref, atol=1e-5), "log_var mismatch"
    assert recons.shape == (B, in_dim) and mu.shape == (B, out_dim) and log_var.shape == (B, out_dim)

    print("KERNEL_OK")
</pallas_src>

<mosaic_0001>
module attributes {stable_mosaic.version = 11 : i64} {
  func.func @context_vae_kernel(%arg0: i32, %arg1: memref<8x128xf32, #tpu.memory_space<vmem>>, %arg2: memref<768x128xf32, #tpu.memory_space<vmem>>, %arg3: memref<8x128xf32, #tpu.memory_space<vmem>>, %arg4: memref<8x128xf32, #tpu.memory_space<vmem>>) attributes {dimension_semantics = [#tpu.dimension_semantics<parallel>], iteration_bounds = array<i64: 1>, scalar_prefetch = 0 : i64, scratch_operands = 0 : i64, tpu.core_type = #tpu.core_type<tc>, window_params = [{transform_indices = @transform_0, window_bounds = array<i64: 8, 128>}, {pipeline_mode = #tpu.pipeline_mode<synchronous>, transform_indices = @transform_1, window_bounds = array<i64: 768, 128>}, {pipeline_mode = #tpu.pipeline_mode<synchronous>, transform_indices = @transform_2, window_bounds = array<i64: 8, 128>}, {transform_indices = @transform_3, window_bounds = array<i64: 8, 128>}]} {
    %c0 = arith.constant 0 : index
    %c0_0 = arith.constant 0 : index
    %0 = vector.load %arg1[%c0, %c0_0] : memref<8x128xf32, #tpu.memory_space<vmem>>, vector<8x128xf32>
    %c0_1 = arith.constant 0 : index
    %c0_2 = arith.constant 0 : index
    %1 = vector.load %arg2[%c0_1, %c0_2] : memref<768x128xf32, #tpu.memory_space<vmem>>, vector<128x128xf32>
    %cst = arith.constant dense<0.000000e+00> : vector<8x128xf32>
    %2 = tpu.matmul %0, %1, %cst {dimension_numbers = #tpu.dot_dimension_numbers<[1], [0], [0], [1], [0, 0, 1, 1], [], []>} : vector<8x128xf32>, vector<128x128xf32>, vector<8x128xf32> -> vector<8x128xf32>
    %c0_3 = arith.constant 0 : index
    %c0_4 = arith.constant 0 : index
    %3 = vector.load %arg3[%c0_3, %c0_4] : memref<8x128xf32, #tpu.memory_space<vmem>>, vector<1x128xf32>
    %4 = vector.broadcast %3 : vector<1x128xf32> to vector<8x128xf32>
    %5 = arith.addf %2, %4 : vector<8x128xf32>
    %cst_5 = arith.constant 0.000000e+00 : f32
    %6 = vector.broadcast %cst_5 : f32 to vector<8x128xf32>
    %7 = arith.maximumf %5, %6 : vector<8x128xf32>
    %c128 = arith.constant 128 : index
    %c0_6 = arith.constant 0 : index
    %8 = vector.load %arg2[%c128, %c0_6] : memref<768x128xf32, #tpu.memory_space<vmem>>, vector<128x128xf32>
    %cst_7 = arith.constant dense<0.000000e+00> : vector<8x128xf32>
    %9 = tpu.matmul %7, %8, %cst_7 {dimension_numbers = #tpu.dot_dimension_numbers<[1], [0], [0], [1], [0, 0, 1, 1], [], []>} : vector<8x128xf32>, vector<128x128xf32>, vector<8x128xf32> -> vector<8x128xf32>
    %c1 = arith.constant 1 : index
    %c0_8 = arith.constant 0 : index
    %10 = vector.load %arg3[%c1, %c0_8] : memref<8x128xf32, #tpu.memory_space<vmem>>, vector<1x128xf32>
    %11 = vector.broadcast %10 : vector<1x128xf32> to vector<8x128xf32>
    %12 = arith.addf %9, %11 : vector<8x128xf32>
    %cst_9 = arith.constant 0.000000e+00 : f32
    %13 = vector.broadcast %cst_9 : f32 to vector<8x128xf32>
    %14 = arith.maximumf %12, %13 : vector<8x128xf32>
    %c256 = arith.constant 256 : index
    %c0_10 = arith.constant 0 : index
    %15 = vector.load %arg2[%c256, %c0_10] : memref<768x128xf32, #tpu.memory_space<vmem>>, vector<128x128xf32>
    %cst_11 = arith.constant dense<0.000000e+00> : vector<8x128xf32>
    %16 = tpu.matmul %14, %15, %cst_11 {dimension_numbers = #tpu.dot_dimension_numbers<[1], [0], [0], [1], [0, 0, 1, 1], [], []>} : vector<8x128xf32>, vector<128x128xf32>, vector<8x128xf32> -> vector<8x128xf32>
    %c2 = arith.constant 2 : index
    %c0_12 = arith.constant 0 : index
    %17 = vector.load %arg3[%c2, %c0_12] : memref<8x128xf32, #tpu.memory_space<vmem>>, vector<1x128xf32>
    %18 = vector.broadcast %17 : vector<1x128xf32> to vector<8x128xf32>
    %19 = arith.addf %16, %18 : vector<8x128xf32>
    %20 = vector.extract_strided_slice %19 {offsets = [0, 48], sizes = [8, 16], strides = [1, 1]} : vector<8x128xf32> to vector<8x16xf32>
    %21 = vector.extract_strided_slice %19 {offsets = [0, 64], sizes = [8, 16], strides = [1, 1]} : vector<8x128xf32> to vector<8x16xf32>
    %22 = vector.extract_strided_slice %0 {offsets = [0, 48], sizes = [8, 16], strides = [1, 1]} : vector<8x128xf32> to vector<8x16xf32>
    %cst_13 = arith.constant 5.000000e-01 : f32
    %23 = vector.broadcast %cst_13 : f32 to vector<8x16xf32>
    %24 = arith.mulf %23, %21 : vector<8x16xf32>
    %25 = math.exp %24 : vector<8x16xf32>
    %26 = arith.mulf %22, %25 : vector<8x16xf32>
    %27 = arith.addf %26, %20 : vector<8x16xf32>
    %c384 = arith.constant 384 : index
    %c0_14 = arith.constant 0 : index
    %28 = vector.load %arg2[%c384, %c0_14] : memref<768x128xf32, #tpu.memory_space<vmem>>, vector<16x128xf32>
    %cst_15 = arith.constant dense<0.000000e+00> : vector<8x128xf32>
    %29 = tpu.matmul %27, %28, %cst_15 {dimension_numbers = #tpu.dot_dimension_numbers<[1], [0], [0], [1], [0, 0, 1, 1], [], []>} : vector<8x16xf32>, vector<16x128xf32>, vector<8x128xf32> -> vector<8x128xf32>
    %c3 = arith.constant 3 : index
    %c0_16 = arith.constant 0 : index
    %30 = vector.load %arg3[%c3, %c0_16] : memref<8x128xf32, #tpu.memory_space<vmem>>, vector<1x128xf32>
    %31 = vector.broadcast %30 : vector<1x128xf32> to vector<8x128xf32>
    %32 = arith.addf %29, %31 : vector<8x128xf32>
    %cst_17 = arith.constant 0.000000e+00 : f32
    %33 = vector.broadcast %cst_17 : f32 to vector<8x128xf32>
    %34 = arith.maximumf %32, %33 : vector<8x128xf32>
    %c512 = arith.constant 512 : index
    %c0_18 = arith.constant 0 : index
    %35 = vector.load %arg2[%c512, %c0_18] : memref<768x128xf32, #tpu.memory_space<vmem>>, vector<128x128xf32>
    %cst_19 = arith.constant dense<0.000000e+00> : vector<8x128xf32>
    %36 = tpu.matmul %34, %35, %cst_19 {dimension_numbers = #tpu.dot_dimension_numbers<[1], [0], [0], [1], [0, 0, 1, 1], [], []>} : vector<8x128xf32>, vector<128x128xf32>, vector<8x128xf32> -> vector<8x128xf32>
    %c4 = arith.constant 4 : index
    %c0_20 = arith.constant 0 : index
    %37 = vector.load %arg3[%c4, %c0_20] : memref<8x128xf32, #tpu.memory_space<vmem>>, vector<1x128xf32>
    %38 = vector.broadcast %37 : vector<1x128xf32> to vector<8x128xf32>
    %39 = arith.addf %36, %38 : vector<8x128xf32>
    %cst_21 = arith.constant 0.000000e+00 : f32
    %40 = vector.broadcast %cst_21 : f32 to vector<8x128xf32>
    %41 = arith.maximumf %39, %40 : vector<8x128xf32>
    %c640 = arith.constant 640 : index
    %c0_22 = arith.constant 0 : index
    %42 = vector.load %arg2[%c640, %c0_22] : memref<768x128xf32, #tpu.memory_space<vmem>>, vector<128x128xf32>
    %cst_23 = arith.constant dense<0.000000e+00> : vector<8x128xf32>
    %43 = tpu.matmul %41, %42, %cst_23 {dimension_numbers = #tpu.dot_dimension_numbers<[1], [0], [0], [1], [0, 0, 1, 1], [], []>} : vector<8x128xf32>, vector<128x128xf32>, vector<8x128xf32> -> vector<8x128xf32>
    %c5 = arith.constant 5 : index
    %c0_24 = arith.constant 0 : index
    %44 = vector.load %arg3[%c5, %c0_24] : memref<8x128xf32, #tpu.memory_space<vmem>>, vector<1x128xf32>
    %45 = vector.broadcast %44 : vector<1x128xf32> to vector<8x128xf32>
    %46 = arith.addf %43, %45 : vector<8x128xf32>
    %47 = arith.addf %46, %19 : vector<8x128xf32>
    %c0_25 = arith.constant 0 : index
    %c0_26 = arith.constant 0 : index
    %48 = vector.load %arg4[%c0_25, %c0_26] : memref<8x128xf32, #tpu.memory_space<vmem>>, vector<8x128xf32>
    tpu.vector_store %arg4[%c0_25, %c0_26], %47 {strides = array<i32>} : memref<8x128xf32, #tpu.memory_space<vmem>>, vector<8x128xf32>,
    return
  }
  func.func @transform_0(%arg0: i32) -> (i32, i32) {
    %c0_i32 = arith.constant 0 : i32
    %c0_i32_0 = arith.constant 0 : i32
    return %arg0, %c0_i32 : i32, i32
  }
  func.func @transform_1(%arg0: i32) -> (i32, i32) {
    %c0_i32 = arith.constant 0 : i32
    %c0_i32_0 = arith.constant 0 : i32
    %c0_i32_1 = arith.constant 0 : i32
    return %c0_i32, %c0_i32_0 : i32, i32
  }
  func.func @transform_2(%arg0: i32) -> (i32, i32) {
    %c0_i32 = arith.constant 0 : i32
    %c0_i32_0 = arith.constant 0 : i32
    %c0_i32_1 = arith.constant 0 : i32
    return %c0_i32, %c0_i32_0 : i32, i32
  }
  func.func @transform_3(%arg0: i32) -> (i32, i32) {
    %c0_i32 = arith.constant 0 : i32
    %c0_i32_0 = arith.constant 0 : i32
    return %arg0, %c0_i32 : i32, i32
  }
}

</mosaic_0001>

<llo_original>
// kernel: context_vae_forward.1
$region0: #{context_vae_forward.1}
  #allocation0 [shape = 'u32[]', space=smem, size = 0x4, offset = 0x4, fixed_abs, tag = 'smem constant byte address 0x4 - core index']
  #allocation1 [shape = 'u32[144,128]{1,0:T(1,128)}', space=vmem, size = 0x12000, scoped, tag = 'internal scratch']
  %s0 = inlined_call_operand.vmem [shape: f32[8,128], index: 0, kind: input, shape index: {}]
  %s1 = inlined_call_operand.hbm [shape: f32[768,128], index: 1, kind: input, shape index: {}]
  %s2 = inlined_call_operand.vmem [shape: f32[8,128], index: 2, kind: input, shape index: {}]
  %s3 = inlined_call_operand.vmem [shape: f32[8,128], index: 3, kind: output, shape index: {}]
  %s4 = sld [smem:[#allocation0]]
  $region26: #{context_vae_forward.1} parent=0
    _
  %s6 = ssub.s32 1, %s4
  %s7 = scalar_select 0, %s6, %s4
  $region1: #{context_vae_forward.1} parent=0
    #allocation2 [shape = 'u8[393216]{0}', space=vmem, size = 0x60000, scoped, tag = 'input window, operand 1, single buffered']
    #allocation3 [shape = 's32[1]{0}', space=sflag, size = 0x4, scoped, tag = 'scoped memory for context_vae_forward.1']
    %8 = vsyncpa [#allocation3], 0
    // Predicated region
    $region2: #{context_vae_forward.1} parent=1 // pred_check
      _
    $region3: #{context_vae_forward.1} parent=1 // pred_check_branch
      %10 = sbr.rel (0) target = $region5
    $region4: #{context_vae_forward.1} parent=1 // pred_region
      _
    $region5: #{context_vae_forward.1} parent=1 // pred_fallthru
      _
    // Predicated region
    $region6: #{context_vae_forward.1} parent=1 // pred_check
      _
    $region7: #{context_vae_forward.1} parent=1 // pred_check_branch
      %12 = sbr.rel (0) target = $region9
    $region8: #{context_vae_forward.1} parent=1 // pred_region
      %s14 = ssub.s32 12288, 12288
      %15 = vsyncadd [#allocation3], %s14
      %s16 = sshll.u32 [#allocation2], 4
      %s17 = int_to_ptr.vmem [resolvable:$true] %s16
      %22 = dma.hbm_to_vmem [thread:$0]  %s1, 12288, %s17, [#allocation3], 128, 128, 8
    $region9: #{context_vae_forward.1} parent=1 // pred_fallthru
      _
    // Predicated region
    $region10: #{context_vae_forward.1} parent=1 // pred_check
      _
    $region11: #{context_vae_forward.1} parent=1 // pred_check_branch
      %24 = sbr.rel (0) target = $region13
    $region12: #{context_vae_forward.1} parent=1 // pred_region
      _
    $region13: #{context_vae_forward.1} parent=1 // pred_fallthru
      _
    // Predicated region
    $region14: #{context_vae_forward.1} parent=1 // pred_check
      _
    $region15: #{context_vae_forward.1} parent=1 // pred_check_branch
      %26 = sbr.rel (0) target = $region17
    $region16: #{context_vae_forward.1} parent=1 // pred_region
      %27 = dma.done [#allocation3], 12288
    $region17: #{context_vae_forward.1} parent=1 // pred_fallthru
      _
    %v28 = vld [vmem:[%s0] sm:$0xff]
    %v29 = vld [vmem:[#allocation2] sm:$0xff]
    %v30 = vld [vmem:[#allocation2 + $0x8] sm:$0xff]
    %v31 = vld [vmem:[#allocation2 + $0x10] sm:$0xff]
    %v32 = vld [vmem:[#allocation2 + $0x18] sm:$0xff]
    %v33 = vld [vmem:[#allocation2 + $0x20] sm:$0xff]
    %v34 = vld [vmem:[#allocation2 + $0x28] sm:$0xff]
    %v35 = vld [vmem:[#allocation2 + $0x30] sm:$0xff]
    %v36 = vld [vmem:[#allocation2 + $0x38] sm:$0xff]
    %v37 = vld [vmem:[#allocation2 + $0x40] sm:$0xff]
    %v38 = vld [vmem:[#allocation2 + $0x48] sm:$0xff]
    %v39 = vld [vmem:[#allocation2 + $0x50] sm:$0xff]
    %v40 = vld [vmem:[#allocation2 + $0x58] sm:$0xff]
    %v41 = vld [vmem:[#allocation2 + $0x60] sm:$0xff]
    %v42 = vld [vmem:[#allocation2 + $0x68] sm:$0xff]
    %v43 = vld [vmem:[#allocation2 + $0x70] sm:$0xff]
    %v44 = vld [vmem:[#allocation2 + $0x78] sm:$0xff]
    %v45 = vld [vmem:[%s2] sm:$0x1]
    %v46 = vlaneseq
    %v47 = vshrl.u32 %v46, 7
    %v48 = vsub.s32 0, %v47
    %v49 = vrot.slane %v45, %v48
    %50 = vmatprep.subr.mxu0 0.0
    %51 = vmatpush1.msra.mxu0 %v29
    %52 = vmatprep.subr.mxu0 0.0
    %53 = vmatpush1.msra.mxu0 %v30
    %54 = vmatprep.subr.mxu0 0.0
    %55 = vmatpush1.msra.mxu0 %v31
    %56 = vmatprep.subr.mxu0 0.0
    %57 = vmatpush1.msra.mxu0 %v32
    %58 = vmatprep.subr.mxu0 0.0
    %59 = vmatpush1.msra.mxu0 %v33
    %60 = vmatprep.subr.mxu0 0.0
    %61 = vmatpush1.msra.mxu0 %v34
    %62 = vmatprep.subr.mxu0 0.0
    %63 = vmatpush1.msra.mxu0 %v35
    %64 = vmatprep.subr.mxu0 0.0
    %65 = vmatpush1.msra.mxu0 %v36
    %66 = vmatprep.subr.mxu0 0.0
    %67 = vmatpush1.msra.mxu0 %v37
    %68 = vmatprep.subr.mxu0 0.0
    %69 = vmatpush1.msra.mxu0 %v38
    %70 = vmatprep.subr.mxu0 0.0
    %71 = vmatpush1.msra.mxu0 %v39
    %72 = vmatprep.subr.mxu0 0.0
    %73 = vmatpush1.msra.mxu0 %v40
    %74 = vmatprep.subr.mxu0 0.0
    %75 = vmatpush1.msra.mxu0 %v41
    %76 = vmatprep.subr.mxu0 0.0
    %77 = vmatpush1.msra.mxu0 %v42
    %78 = vmatprep.subr.mxu0 0.0
    %79 = vmatpush1.msra.mxu0 %v43
    %80 = vmatprep.subr.mxu0 0.0
    %81 = vmatpush1.msra.mxu0 %v44
    %82 = vmatprep.subr.mxu0 0.0
    %83 = vmatpush1.msra.mxu0 0.0
    %84 = vmatprep.subr.mxu0 0.0
    %85 = vmatpush1.msra.mxu0 0.0
    %86 = vmatprep.subr.mxu0 0.0
    %87 = vmatpush1.msra.mxu0 0.0
    %88 = vmatprep.subr.mxu0 0.0
    %89 = vmatpush1.msra.mxu0 0.0
    %90 = vmatprep.subr.mxu0 0.0
    %91 = vmatpush1.msra.mxu0 0.0
    %92 = vmatprep.subr.mxu0 0.0
    %93 = vmatpush1.msra.mxu0 0.0
    %94 = vmatprep.subr.mxu0 0.0
    %95 = vmatpush1.msra.mxu0 0.0
    %96 = vmatprep.subr.mxu0 0.0
    %97 = vmatpush1.msra.mxu0 0.0
    %98 = vmatprep.subr.mxu0 0.0
    %99 = vmatpush1.msra.mxu0 0.0
    %100 = vmatprep.subr.mxu0 0.0
    %101 = vmatpush1.msra.mxu0 0.0
    %102 = vmatprep.subr.mxu0 0.0
    %103 = vmatpush1.msra.mxu0 0.0
    %104 = vmatprep.subr.mxu0 0.0
    %105 = vmatpush1.msra.mxu0 0.0
    %106 = vmatprep.subr.mxu0 0.0
    %107 = vmatpush1.msra.mxu0 0.0
    %108 = vmatprep.subr.mxu0 0.0
    %109 = vmatpush1.msra.mxu0 0.0
    %110 = vmatprep.subr.mxu0 0.0
    %111 = vmatpush1.msra.mxu0 0.0
    %112 = vmatprep.subr.mxu0 0.0
    %113 = vmatpush1.msra.mxu0 0.0
    %114 = vmatprep.mubr.f32.mxu0 0.0
    %115 = vmatmul.mubr.f32.gmra.mrb[0].mxu0 %v28
    %v116 = vpop.f32.mrb[0].mxu0
    %v117 = vadd.f32 %v49, %v116
    %v118 = vpop.f32.mrb[0].mxu0
    %119 = vdwg.mxu0
    %v120 = vmax.f32 %v117, 0.0
    %v121 = vld [vmem:[#allocation2 + $0x80] sm:$0xff]
    %v122 = vld [vmem:[#allocation2 + $0x88] sm:$0xff]
    %v123 = vld [vmem:[#allocation2 + $0x90] sm:$0xff]
    %v124 = vld [vmem:[#allocation2 + $0x98] sm:$0xff]
    %v125 = vld [vmem:[#allocation2 + $0xa0] sm:$0xff]
    %v126 = vld [vmem:[#allocation2 + $0xa8] sm:$0xff]
    %v127 = vld [vmem:[#allocation2 + $0xb0] sm:$0xff]
    %v128 = vld [vmem:[#allocation2 + $0xb8] sm:$0xff]
    %v129 = vld [vmem:[#allocation2 + $0xc0] sm:$0xff]
    %v130 = vld [vmem:[#allocation2 + $0xc8] sm:$0xff]
    %v131 = vld [vmem:[#allocation2 + $0xd0] sm:$0xff]
    %v132 = vld [vmem:[#allocation2 + $0xd8] sm:$0xff]
    %v133 = vld [vmem:[#allocation2 + $0xe0] sm:$0xff]
    %v134 = vld [vmem:[#allocation2 + $0xe8] sm:$0xff]
    %v135 = vld [vmem:[#allocation2 + $0xf0] sm:$0xff]
    %v136 = vld [vmem:[#allocation2 + $0xf8] sm:$0xff]
    %v137 = vld [vmem:[%s2 + $0x1] sm:$0x1]
    %v138 = vlaneseq
    %v139 = vshrl.u32 %v138, 7
    %v140 = vsub.s32 0, %v139
    %v141 = vrot.slane %v137, %v140
    %142 = vmatprep.subr.mxu0 0.0
    %143 = vmatpush1.msra.mxu0 %v121
    %144 = vmatprep.subr.mxu0 0.0
    %145 = vmatpush1.msra.mxu0 %v122
    %146 = vmatprep.subr.mxu0 0.0
    %147 = vmatpush1.msra.mxu0 %v123
    %148 = vmatprep.subr.mxu0 0.0
    %149 = vmatpush1.msra.mxu0 %v124
    %150 = vmatprep.subr.mxu0 0.0
    %151 = vmatpush1.msra.mxu0 %v125
    %152 = vmatprep.subr.mxu0 0.0
    %153 = vmatpush1.msra.mxu0 %v126
    %154 = vmatprep.subr.mxu0 0.0
    %155 = vmatpush1.msra.mxu0 %v127
    %156 = vmatprep.subr.mxu0 0.0
    %157 = vmatpush1.msra.mxu0 %v128
    %158 = vmatprep.subr.mxu0 0.0
    %159 = vmatpush1.msra.mxu0 %v129
    %160 = vmatprep.subr.mxu0 0.0
    %161 = vmatpush1.msra.mxu0 %v130
    %162 = vmatprep.subr.mxu0 0.0
    %163 = vmatpush1.msra.mxu0 %v131
    %164 = vmatprep.subr.mxu0 0.0
    %165 = vmatpush1.msra.mxu0 %v132
    %166 = vmatprep.subr.mxu0 0.0
    %167 = vmatpush1.msra.mxu0 %v133
    %168 = vmatprep.subr.mxu0 0.0
    %169 = vmatpush1.msra.mxu0 %v134
    %170 = vmatprep.subr.mxu0 0.0
    %171 = vmatpush1.msra.mxu0 %v135
    %172 = vmatprep.subr.mxu0 0.0
    %173 = vmatpush1.msra.mxu0 %v136
    %174 = vmatprep.subr.mxu0 0.0
    %175 = vmatpush1.msra.mxu0 0.0
    %176 = vmatprep.subr.mxu0 0.0
    %177 = vmatpush1.msra.mxu0 0.0
    %178 = vmatprep.subr.mxu0 0.0
    %179 = vmatpush1.msra.mxu0 0.0
    %180 = vmatprep.subr.mxu0 0.0
    %181 = vmatpush1.msra.mxu0 0.0
    %182 = vmatprep.subr.mxu0 0.0
    %183 = vmatpush1.msra.mxu0 0.0
    %184 = vmatprep.subr.mxu0 0.0
    %185 = vmatpush1.msra.mxu0 0.0
    %186 = vmatprep.subr.mxu0 0.0
    %187 = vmatpush1.msra.mxu0 0.0
    %188 = vmatprep.subr.mxu0 0.0
    %189 = vmatpush1.msra.mxu0 0.0
    %190 = vmatprep.subr.mxu0 0.0
    %191 = vmatpush1.msra.mxu0 0.0
    %192 = vmatprep.subr.mxu0 0.0
    %193 = vmatpush1.msra.mxu0 0.0
    %194 = vmatprep.subr.mxu0 0.0
    %195 = vmatpush1.msra.mxu0 0.0
    %196 = vmatprep.subr.mxu0 0.0
    %197 = vmatpush1.msra.mxu0 0.0
    %198 = vmatprep.subr.mxu0 0.0
    %199 = vmatpush1.msra.mxu0 0.0
    %200 = vmatprep.subr.mxu0 0.0
    %201 = vmatpush1.msra.mxu0 0.0
    %202 = vmatprep.subr.mxu0 0.0
    %203 = vmatpush1.msra.mxu0 0.0
    %204 = vmatprep.subr.mxu0 0.0
    %205 = vmatpush1.msra.mxu0 0.0
    %206 = vmatprep.mubr.f32.mxu0 0.0
    %207 = vmatmul.mubr.f32.gmra.mrb[0].mxu0 %v120
    %v208 = vpop.f32.mrb[0].mxu0
    %v209 = vadd.f32 %v141, %v208
    %v210 = vpop.f32.mrb[0].mxu0
    %211 = vdwg.mxu0
    %v212 = vmax.f32 %v209, 0.0
    %v213 = vld [vmem:[#allocation2 + $0x100] sm:$0xff]
    %v214 = vld [vmem:[#allocation2 + $0x108] sm:$0xff]
    %v215 = vld [vmem:[#allocation2 + $0x110] sm:$0xff]
    %v216 = vld [vmem:[#allocation2 + $0x118] sm:$0xff]
    %v217 = vld [vmem:[#allocation2 + $0x120] sm:$0xff]
    %v218 = vld [vmem:[#allocation2 + $0x128] sm:$0xff]
    %v219 = vld [vmem:[#allocation2 + $0x130] sm:$0xff]
    %v220 = vld [vmem:[#allocation2 + $0x138] sm:$0xff]
    %v221 = vld [vmem:[#allocation2 + $0x140] sm:$0xff]
    %v222 = vld [vmem:[#allocation2 + $0x148] sm:$0xff]
    %v223 = vld [vmem:[#allocation2 + $0x150] sm:$0xff]
    %v224 = vld [vmem:[#allocation2 + $0x158] sm:$0xff]
    %v225 = vld [vmem:[#allocation2 + $0x160] sm:$0xff]
    %v226 = vld [vmem:[#allocation2 + $0x168] sm:$0xff]
    %v227 = vld [vmem:[#allocation2 + $0x170] sm:$0xff]
    %v228 = vld [vmem:[#allocation2 + $0x178] sm:$0xff]
    %v229 = vld [vmem:[%s2 + $0x2] sm:$0x1]
    %v230 = vlaneseq
    %v231 = vshrl.u32 %v230, 7
    %v232 = vsub.s32 0, %v231
    %v233 = vrot.slane %v229, %v232
    %234 = vmatprep.subr.mxu0 0.0
    %235 = vmatpush1.msra.mxu0 %v213
    %236 = vmatprep.subr.mxu0 0.0
    %237 = vmatpush1.msra.mxu0 %v214
    %238 = vmatprep.subr.mxu0 0.0
    %239 = vmatpush1.msra.mxu0 %v215
    %240 = vmatprep.subr.mxu0 0.0
    %241 = vmatpush1.msra.mxu0 %v216
    %242 = vmatprep.subr.mxu0 0.0
    %243 = vmatpush1.msra.mxu0 %v217
    %244 = vmatprep.subr.mxu0 0.0
    %245 = vmatpush1.msra.mxu0 %v218
    %246 = vmatprep.subr.mxu0 0.0
    %247 = vmatpush1.msra.mxu0 %v219
    %248 = vmatprep.subr.mxu0 0.0
    %249 = vmatpush1.msra.mxu0 %v220
    %250 = vmatprep.subr.mxu0 0.0
    %251 = vmatpush1.msra.mxu0 %v221
    %252 = vmatprep.subr.mxu0 0.0
    %253 = vmatpush1.msra.mxu0 %v222
    %254 = vmatprep.subr.mxu0 0.0
    %255 = vmatpush1.msra.mxu0 %v223
    %256 = vmatprep.subr.mxu0 0.0
    %257 = vmatpush1.msra.mxu0 %v224
    %258 = vmatprep.subr.mxu0 0.0
    %259 = vmatpush1.msra.mxu0 %v225
    %260 = vmatprep.subr.mxu0 0.0
    %261 = vmatpush1.msra.mxu0 %v226
    %262 = vmatprep.subr.mxu0 0.0
    %263 = vmatpush1.msra.mxu0 %v227
    %264 = vmatprep.subr.mxu0 0.0
    %265 = vmatpush1.msra.mxu0 %v228
    %266 = vmatprep.subr.mxu0 0.0
    %267 = vmatpush1.msra.mxu0 0.0
    %268 = vmatprep.subr.mxu0 0.0
    %269 = vmatpush1.msra.mxu0 0.0
    %270 = vmatprep.subr.mxu0 0.0
    %271 = vmatpush1.msra.mxu0 0.0
    %272 = vmatprep.subr.mxu0 0.0
    %273 = vmatpush1.msra.mxu0 0.0
    %274 = vmatprep.subr.mxu0 0.0
    %275 = vmatpush1.msra.mxu0 0.0
    %276 = vmatprep.subr.mxu0 0.0
    %277 = vmatpush1.msra.mxu0 0.0
    %278 = vmatprep.subr.mxu0 0.0
    %279 = vmatpush1.msra.mxu0 0.0
    %280 = vmatprep.subr.mxu0 0.0
    %281 = vmatpush1.msra.mxu0 0.0
    %282 = vmatprep.subr.mxu0 0.0
    %283 = vmatpush1.msra.mxu0 0.0
    %284 = vmatprep.subr.mxu0 0.0
    %285 = vmatpush1.msra.mxu0 0.0
    %286 = vmatprep.subr.mxu0 0.0
    %287 = vmatpush1.msra.mxu0 0.0
    %288 = vmatprep.subr.mxu0 0.0
    %289 = vmatpush1.msra.mxu0 0.0
    %290 = vmatprep.subr.mxu0 0.0
    %291 = vmatpush1.msra.mxu0 0.0
    %292 = vmatprep.subr.mxu0 0.0
    %293 = vmatpush1.msra.mxu0 0.0
    %294 = vmatprep.subr.mxu0 0.0
    %295 = vmatpush1.msra.mxu0 0.0
    %296 = vmatprep.subr.mxu0 0.0
    %297 = vmatpush1.msra.mxu0 0.0
    %298 = vmatprep.mubr.f32.mxu0 0.0
    %299 = vmatmul.mubr.f32.gmra.mrb[0].mxu0 %v212
    %v300 = vpop.f32.mrb[0].mxu0
    %v301 = vadd.f32 %v233, %v300
    %v302 = vpop.f32.mrb[0].mxu0
    %303 = vdwg.mxu0
    %v304 = vmul.f32 %v301, 0.5
    %v305 = vmul.f32 %v304, 1.442695
    %v306 = vpow.pop %v305
    %308 = vrot.lane.b32.xlu0 %v306, 112
    %v309 = vpop.permute.xlu0 %308
    %v311 = vmul.f32 %v28, %v309
    %v312 = vadd.f32 %v311, %v301
    %v313 = vld [vmem:[#allocation2 + $0x180] sm:$0xff]
    %v314 = vld [vmem:[#allocation2 + $0x188] sm:$0xff]
    %v315 = vld [vmem:[%s2 + $0x3] sm:$0x1]
    %v316 = vlaneseq
    %v317 = vshrl.u32 %v316, 7
    %v318 = vsub.s32 0, %v317
    %v319 = vrot.slane %v315, %v318
    %321 = vrot.lane.b32.xlu0 %v312, 80
    %v322 = vpop.permute.xlu0 %321
    %vm323 = vcmask 130048
    %v324 = vsel %vm323, %v322, 0
    %326 = vmatprep.subr.mxu0 0.0
    %327 = vmatpush1.msra.mxu0 %v313
    %328 = vmatprep.subr.mxu0 0.0
    %329 = vmatpush1.msra.mxu0 %v314
    %330 = vmatprep.subr.mxu0 0.0
    %331 = vmatpush1.msra.mxu0 0.0
    %332 = vmatprep.subr.mxu0 0.0
    %333 = vmatpush1.msra.mxu0 0.0
    %334 = vmatprep.subr.mxu0 0.0
    %335 = vmatpush1.msra.mxu0 0.0
    %336 = vmatprep.subr.mxu0 0.0
    %337 = vmatpush1.msra.mxu0 0.0
    %338 = vmatprep.subr.mxu0 0.0
    %339 = vmatpush1.msra.mxu0 0.0
    %340 = vmatprep.subr.mxu0 0.0
    %341 = vmatpush1.msra.mxu0 0.0
    %342 = vmatprep.subr.mxu0 0.0
    %343 = vmatpush1.msra.mxu0 0.0
    %344 = vmatprep.subr.mxu0 0.0
    %345 = vmatpush1.msra.mxu0 0.0
    %346 = vmatprep.subr.mxu0 0.0
    %347 = vmatpush1.msra.mxu0 0.0
    %348 = vmatprep.subr.mxu0 0.0
    %349 = vmatpush1.msra.mxu0 0.0
    %350 = vmatprep.subr.mxu0 0.0
    %351 = vmatpush1.msra.mxu0 0.0
    %352 = vmatprep.subr.mxu0 0.0
    %353 = vmatpush1.msra.mxu0 0.0
    %354 = vmatprep.subr.mxu0 0.0
    %355 = vmatpush1.msra.mxu0 0.0
    %356 = vmatprep.subr.mxu0 0.0
    %357 = vmatpush1.msra.mxu0 0.0
    %358 = vmatprep.subr.mxu0 0.0
    %359 = vmatpush1.msra.mxu0 0.0
    %360 = vmatprep.subr.mxu0 0.0
    %361 = vmatpush1.msra.mxu0 0.0
    %362 = vmatprep.subr.mxu0 0.0
    %363 = vmatpush1.msra.mxu0 0.0
    %364 = vmatprep.subr.mxu0 0.0
    %365 = vmatpush1.msra.mxu0 0.0
    %366 = vmatprep.subr.mxu0 0.0
    %367 = vmatpush1.msra.mxu0 0.0
    %368 = vmatprep.subr.mxu0 0.0
    %369 = vmatpush1.msra.mxu0 0.0
    %370 = vmatprep.subr.mxu0 0.0
    %371 = vmatpush1.msra.mxu0 0.0
    %372 = vmatprep.subr.mxu0 0.0
    %373 = vmatpush1.msra.mxu0 0.0
    %374 = vmatprep.subr.mxu0 0.0
    %375 = vmatpush1.msra.mxu0 0.0
    %376 = vmatprep.subr.mxu0 0.0
    %377 = vmatpush1.msra.mxu0 0.0
    %378 = vmatprep.subr.mxu0 0.0
    %379 = vmatpush1.msra.mxu0 0.0
    %380 = vmatprep.subr.mxu0 0.0
    %381 = vmatpush1.msra.mxu0 0.0
    %382 = vmatprep.subr.mxu0 0.0
    %383 = vmatpush1.msra.mxu0 0.0
    %384 = vmatprep.subr.mxu0 0.0
    %385 = vmatpush1.msra.mxu0 0.0
    %386 = vmatprep.subr.mxu0 0.0
    %387 = vmatpush1.msra.mxu0 0.0
    %388 = vmatprep.subr.mxu0 0.0
    %389 = vmatpush1.msra.mxu0 0.0
    %390 = vmatprep.mubr.f32.mxu0 0.0
    %391 = vmatmul.mubr.f32.gmra.mrb[0].mxu0 %v324
    %v392 = vpop.f32.mrb[0].mxu0
    %v393 = vadd.f32 %v319, %v392
    %v394 = vpop.f32.mrb[0].mxu0
    %395 = vdwg.mxu0
    %v396 = vmax.f32 %v393, 0.0
    %v397 = vld [vmem:[#allocation2 + $0x200] sm:$0xff]
    %v398 = vld [vmem:[#allocation2 + $0x208] sm:$0xff]
    %v399 = vld [vmem:[#allocation2 + $0x210] sm:$0xff]
    %v400 = vld [vmem:[#allocation2 + $0x218] sm:$0xff]
    %v401 = vld [vmem:[#allocation2 + $0x220] sm:$0xff]
    %v402 = vld [vmem:[#allocation2 + $0x228] sm:$0xff]
    %v403 = vld [vmem:[#allocation2 + $0x230] sm:$0xff]
    %v404 = vld [vmem:[#allocation2 + $0x238] sm:$0xff]
    %v405 = vld [vmem:[#allocation2 + $0x240] sm:$0xff]
    %v406 = vld [vmem:[#allocation2 + $0x248] sm:$0xff]
    %v407 = vld [vmem:[#allocation2 + $0x250] sm:$0xff]
    %v408 = vld [vmem:[#allocation2 + $0x258] sm:$0xff]
    %v409 = vld [vmem:[#allocation2 + $0x260] sm:$0xff]
    %v410 = vld [vmem:[#allocation2 + $0x268] sm:$0xff]
    %v411 = vld [vmem:[#allocation2 + $0x270] sm:$0xff]
    %v412 = vld [vmem:[#allocation2 + $0x278] sm:$0xff]
    %v413 = vld [vmem:[%s2 + $0x4] sm:$0x1]
    %v414 = vlaneseq
    %v415 = vshrl.u32 %v414, 7
    %v416 = vsub.s32 0, %v415
    %v417 = vrot.slane %v413, %v416
    %418 = vmatprep.subr.mxu0 0.0
    %419 = vmatpush1.msra.mxu0 %v397
    %420 = vmatprep.subr.mxu0 0.0
    %421 = vmatpush1.msra.mxu0 %v398
    %422 = vmatprep.subr.mxu0 0.0
    %423 = vmatpush1.msra.mxu0 %v399
    %424 = vmatprep.subr.mxu0 0.0
    %425 = vmatpush1.msra.mxu0 %v400
    %426 = vmatprep.subr.mxu0 0.0
    %427 = vmatpush1.msra.mxu0 %v401
    %428 = vmatprep.subr.mxu0 0.0
    %429 = vmatpush1.msra.mxu0 %v402
    %430 = vmatprep.subr.mxu0 0.0
    %431 = vmatpush1.msra.mxu0 %v403
    %432 = vmatprep.subr.mxu0 0.0
    %433 = vmatpush1.msra.mxu0 %v404
    %434 = vmatprep.subr.mxu0 0.0
    %435 = vmatpush1.msra.mxu0 %v405
    %436 = vmatprep.subr.mxu0 0.0
    %437 = vmatpush1.msra.mxu0 %v406
    %438 = vmatprep.subr.mxu0 0.0
    %439 = vmatpush1.msra.mxu0 %v407
    %440 = vmatprep.subr.mxu0 0.0
    %441 = vmatpush1.msra.mxu0 %v408
    %442 = vmatprep.subr.mxu0 0.0
    %443 = vmatpush1.msra.mxu0 %v409
    %444 = vmatprep.subr.mxu0 0.0
    %445 = vmatpush1.msra.mxu0 %v410
    %446 = vmatprep.subr.mxu0 0.0
    %447 = vmatpush1.msra.mxu0 %v411
    %448 = vmatprep.subr.mxu0 0.0
    %449 = vmatpush1.msra.mxu0 %v412
    %450 = vmatprep.subr.mxu0 0.0
    %451 = vmatpush1.msra.mxu0 0.0
    %452 = vmatprep.subr.mxu0 0.0
    %453 = vmatpush1.msra.mxu0 0.0
    %454 = vmatprep.subr.mxu0 0.0
    %455 = vmatpush1.msra.mxu0 0.0
    %456 = vmatprep.subr.mxu0 0.0
    %457 = vmatpush1.msra.mxu0 0.0
    %458 = vmatprep.subr.mxu0 0.0
    %459 = vmatpush1.msra.mxu0 0.0
    %460 = vmatprep.subr.mxu0 0.0
    %461 = vmatpush1.msra.mxu0 0.0
    %462 = vmatprep.subr.mxu0 0.0
    %463 = vmatpush1.msra.mxu0 0.0
    %464 = vmatprep.subr.mxu0 0.0
    %465 = vmatpush1.msra.mxu0 0.0
    %466 = vmatprep.subr.mxu0 0.0
    %467 = vmatpush1.msra.mxu0 0.0
    %468 = vmatprep.subr.mxu0 0.0
    %469 = vmatpush1.msra.mxu0 0.0
    %470 = vmatprep.subr.mxu0 0.0
    %471 = vmatpush1.msra.mxu0 0.0
    %472 = vmatprep.subr.mxu0 0.0
    %473 = vmatpush1.msra.mxu0 0.0
    %474 = vmatprep.subr.mxu0 0.0
    %475 = vmatpush1.msra.mxu0 0.0
    %476 = vmatprep.subr.mxu0 0.0
    %477 = vmatpush1.msra.mxu0 0.0
    %478 = vmatprep.subr.mxu0 0.0
    %479 = vmatpush1.msra.mxu0 0.0
    %480 = vmatprep.subr.mxu0 0.0
    %481 = vmatpush1.msra.mxu0 0.0
    %482 = vmatprep.mubr.f32.mxu0 0.0
    %483 = vmatmul.mubr.f32.gmra.mrb[0].mxu0 %v396
    %v484 = vpop.f32.mrb[0].mxu0
    %v485 = vadd.f32 %v417, %v484
    %v486 = vpop.f32.mrb[0].mxu0
    %487 = vdwg.mxu0
    %v488 = vmax.f32 %v485, 0.0
    %v489 = vld [vmem:[#allocation2 + $0x280] sm:$0xff]
    %v490 = vld [vmem:[#allocation2 + $0x288] sm:$0xff]
    %v491 = vld [vmem:[#allocation2 + $0x290] sm:$0xff]
    %v492 = vld [vmem:[#allocation2 + $0x298] sm:$0xff]
    %v493 = vld [vmem:[#allocation2 + $0x2a0] sm:$0xff]
    %v494 = vld [vmem:[#allocation2 + $0x2a8] sm:$0xff]
    %v495 = vld [vmem:[#allocation2 + $0x2b0] sm:$0xff]
    %v496 = vld [vmem:[#allocation2 + $0x2b8] sm:$0xff]
    %v497 = vld [vmem:[#allocation2 + $0x2c0] sm:$0xff]
    %v498 = vld [vmem:[#allocation2 + $0x2c8] sm:$0xff]
    %v499 = vld [vmem:[#allocation2 + $0x2d0] sm:$0xff]
    %v500 = vld [vmem:[#allocation2 + $0x2d8] sm:$0xff]
    %v501 = vld [vmem:[#allocation2 + $0x2e0] sm:$0xff]
    %v502 = vld [vmem:[#allocation2 + $0x2e8] sm:$0xff]
    %v503 = vld [vmem:[#allocation2 + $0x2f0] sm:$0xff]
    %v504 = vld [vmem:[#allocation2 + $0x2f8] sm:$0xff]
    %v505 = vld [vmem:[%s2 + $0x5] sm:$0x1]
    %v506 = vlaneseq
    %v507 = vshrl.u32 %v506, 7
    %v508 = vsub.s32 0, %v507
    %v509 = vrot.slane %v505, %v508
    %510 = vmatprep.subr.mxu0 0.0
    %511 = vmatpush1.msra.mxu0 %v489
    %512 = vmatprep.subr.mxu0 0.0
    %513 = vmatpush1.msra.mxu0 %v490
    %514 = vmatprep.subr.mxu0 0.0
    %515 = vmatpush1.msra.mxu0 %v491
    %516 = vmatprep.subr.mxu0 0.0
    %517 = vmatpush1.msra.mxu0 %v492
    %518 = vmatprep.subr.mxu0 0.0
    %519 = vmatpush1.msra.mxu0 %v493
    %520 = vmatprep.subr.mxu0 0.0
    %521 = vmatpush1.msra.mxu0 %v494
    %522 = vmatprep.subr.mxu0 0.0
    %523 = vmatpush1.msra.mxu0 %v495
    %524 = vmatprep.subr.mxu0 0.0
    %525 = vmatpush1.msra.mxu0 %v496
    %526 = vmatprep.subr.mxu0 0.0
    %527 = vmatpush1.msra.mxu0 %v497
    %528 = vmatprep.subr.mxu0 0.0
    %529 = vmatpush1.msra.mxu0 %v498
    %530 = vmatprep.subr.mxu0 0.0
    %531 = vmatpush1.msra.mxu0 %v499
    %532 = vmatprep.subr.mxu0 0.0
    %533 = vmatpush1.msra.mxu0 %v500
    %534 = vmatprep.subr.mxu0 0.0
    %535 = vmatpush1.msra.mxu0 %v501
    %536 = vmatprep.subr.mxu0 0.0
    %537 = vmatpush1.msra.mxu0 %v502
    %538 = vmatprep.subr.mxu0 0.0
    %539 = vmatpush1.msra.mxu0 %v503
    %540 = vmatprep.subr.mxu0 0.0
    %541 = vmatpush1.msra.mxu0 %v504
    %542 = vmatprep.subr.mxu0 0.0
    %543 = vmatpush1.msra.mxu0 0.0
    %544 = vmatprep.subr.mxu0 0.0
    %545 = vmatpush1.msra.mxu0 0.0
    %546 = vmatprep.subr.mxu0 0.0
    %547 = vmatpush1.msra.mxu0 0.0
    %548 = vmatprep.subr.mxu0 0.0
    %549 = vmatpush1.msra.mxu0 0.0
    %550 = vmatprep.subr.mxu0 0.0
    %551 = vmatpush1.msra.mxu0 0.0
    %552 = vmatprep.subr.mxu0 0.0
    %553 = vmatpush1.msra.mxu0 0.0
    %554 = vmatprep.subr.mxu0 0.0
    %555 = vmatpush1.msra.mxu0 0.0
    %556 = vmatprep.subr.mxu0 0.0
    %557 = vmatpush1.msra.mxu0 0.0
    %558 = vmatprep.subr.mxu0 0.0
    %559 = vmatpush1.msra.mxu0 0.0
    %560 = vmatprep.subr.mxu0 0.0
    %561 = vmatpush1.msra.mxu0 0.0
    %562 = vmatprep.subr.mxu0 0.0
    %563 = vmatpush1.msra.mxu0 0.0
    %564 = vmatprep.subr.mxu0 0.0
    %565 = vmatpush1.msra.mxu0 0.0
    %566 = vmatprep.subr.mxu0 0.0
    %567 = vmatpush1.msra.mxu0 0.0
    %568 = vmatprep.subr.mxu0 0.0
    %569 = vmatpush1.msra.mxu0 0.0
    %570 = vmatprep.subr.mxu0 0.0
    %571 = vmatpush1.msra.mxu0 0.0
    %572 = vmatprep.subr.mxu0 0.0
    %573 = vmatpush1.msra.mxu0 0.0
    %574 = vmatprep.mubr.f32.mxu0 0.0
    %575 = vmatmul.mubr.f32.gmra.mrb[0].mxu0 %v488
    %v576 = vpop.f32.mrb[0].mxu0
    %v577 = vadd.f32 %v509, %v576
    %v578 = vpop.f32.mrb[0].mxu0
    %579 = vdwg.mxu0
    %v580 = vadd.f32 %v577, %v301
    %581 = vst [vmem:[%s3] sm:$0xff] %v580
    // Predicated region
    $region18: #{context_vae_forward.1} parent=1 // pred_check
      _
    $region19: #{context_vae_forward.1} parent=1 // pred_check_branch
      %583 = sbr.rel (0) target = $region21
    $region20: #{context_vae_forward.1} parent=1 // pred_region
      _
    $region21: #{context_vae_forward.1} parent=1 // pred_fallthru
      _
    // Predicated region
    $region22: #{context_vae_forward.1} parent=1 // pred_check
      _
    $region23: #{context_vae_forward.1} parent=1 // pred_check_branch
      %585 = sbr.rel (0) target = $region25
    $region24: #{context_vae_forward.1} parent=1 // pred_region
      _
    $region25: #{context_vae_forward.1} parent=1 // pred_fallthru
      _
    %586 = vsyncpa [#allocation3], 1

</llo_original>
